<compile_context>
chip_gen: v5e
topology: v5e:2x2
jax: 0.10.0
libtpu: 0.0.40
codegen_flags: <defaults>
</compile_context>

<pallas_src>
import functools

import jax
import jax.numpy as jnp
from jax.experimental import pallas as pl
from jax.experimental.pallas import tpu as pltpu


def _tf_linear_att_kernel(x_ref, wq_t_ref, wp_t_ref, o_ref, *, n, d, inv_n, use_mask):
    X = x_ref[...]                                   # (TB, S, 2d) f32
    X1 = X[:, :, :d]                                 # (TB, S, d)  "key" half
    X2 = X[:, :, d:]                                 # (TB, S, d)  "value" half
    u = X[:, n, :d]                                  # (TB, d)     query row, first half

    # a = u @ w_q^T  (tiny MXU matmul, shared weight across the batch tile)
    a = jnp.dot(u, wq_t_ref[...], preferred_element_type=jnp.float32)       # (TB, d)

    # scores s[b, k] = <a[b], X1[b, k]>  (VPU multiply + lane reduce)
    s = jnp.sum(a[:, None, :] * X1, axis=-1)                                 # (TB, S)
    if use_mask:
        # M is identity with M[n, n] = 0  =>  just zero score column n.
        kk = jax.lax.broadcasted_iota(jnp.int32, s.shape, 1)
        s = jnp.where(kk == n, 0.0, s)

    # t[b, :] = sum_k s[b, k] * X2[b, k, :]  (VPU multiply + sublane reduce)
    t = jnp.sum(s[:, :, None] * X2, axis=1)                                  # (TB, d)

    # e = t @ w_p^T
    e = jnp.dot(t, wp_t_ref[...], preferred_element_type=jnp.float32)        # (TB, d)

    o_ref[...] = (X[:, n, d:] + e * inv_n).astype(o_ref.dtype)


def tf_linear_att_forward(input_x, w_p, w_q, n, d, mask=True, block_b=None):
    """Pallas implementation of TF_linear_att.forward.

    input_x: (B, n+1, 2d) float32; w_p = params[0], w_q = params[1], each (d, d).
    Returns (B, d) == attention(input_x)[:, -1, d:].
    """
    B, S, F = input_x.shape
    assert S == n + 1 and F == 2 * d
    f32 = jnp.float32
    x = input_x.astype(f32)

    # Batch-tile size: fill sublanes, keep >=2 grid steps when B is large (v7x: 2 TCs).
    if block_b is None:
        if B <= 8:
            block_b = B
        else:
            block_b = min(128, max(8, 8 * ((B + 15) // 16)))
    Bp = ((B + block_b - 1) // block_b) * block_b
    if Bp != B:
        x = jnp.pad(x, ((0, Bp - B), (0, 0), (0, 0)))  # zero rows -> zero outputs, sliced off

    # Pre-transpose the (d, d) weights once outside the grid loop.
    wq_t = jnp.asarray(w_q, f32).T
    wp_t = jnp.asarray(w_p, f32).T

    kernel = functools.partial(
        _tf_linear_att_kernel, n=n, d=d, inv_n=1.0 / float(n), use_mask=bool(mask))

    n_tiles = Bp // block_b
    flops_per_b = 2 * (2 * d * d + 2 * S * d)
    cost = pl.CostEstimate(
        flops=Bp * flops_per_b,
        transcendentals=0,
        bytes_accessed=Bp * S * F * 4 + 2 * d * d * 4 + Bp * d * 4)

    y = pl.pallas_call(
        kernel,
        out_shape=jax.ShapeDtypeStruct((Bp, d), f32),
        grid_spec=pltpu.PrefetchScalarGridSpec(
            num_scalar_prefetch=0,
            grid=(n_tiles,),
            in_specs=[
                pl.BlockSpec((block_b, S, F), lambda b: (b, 0, 0)),   # x batch tile
                pl.BlockSpec((d, d), lambda b: (0, 0)),               # w_q^T (whole array)
                pl.BlockSpec((d, d), lambda b: (0, 0)),               # w_p^T (whole array)
            ],
            out_specs=pl.BlockSpec((block_b, d), lambda b: (b, 0)),
        ),
        compiler_params=pltpu.CompilerParams(
            dimension_semantics=("parallel",)),
        cost_estimate=cost,
    )(x, wq_t, wp_t)

    return y[:B].astype(input_x.dtype)


def tf_linear_att_reference(input_x, w_p, w_q, n, d, mask=True):
    """Pure-JAX transcription of the torch einsum chain (for correctness check)."""
    f32 = jnp.float32
    zero_dd = jnp.zeros((d, d), f32)
    zero_d2d = jnp.zeros((d, 2 * d), f32)
    P_full = jnp.concatenate(
        [zero_d2d, jnp.concatenate([zero_dd, w_p], axis=1)], axis=0)
    Q_full = jnp.concatenate(
        [jnp.concatenate([w_q, zero_dd], axis=0), zero_d2d.T], axis=1)
    M = jnp.diag(jnp.concatenate([jnp.ones((n,), f32), jnp.zeros((1,), f32)]))
    x = input_x
    out = jnp.einsum('ab,bcd->acd', Q_full, jnp.transpose(x, (2, 1, 0)))
    out = jnp.einsum('abc,bdc->adc', jnp.transpose(x, (1, 2, 0)), out)
    if mask:
        out = jnp.einsum('ab,bcd->acd', M, out)
    out = jnp.einsum('abc,bdc->adc', jnp.transpose(x, (2, 1, 0)), out)
    out = jnp.einsum('ab,bcd->acd', P_full, out)
    out = x + jnp.transpose(out, (2, 1, 0)) / n
    return out[:, -1, d:]


if __name__ == "__main__":
    n, d, B = 7, 16, 2           # seq = n+1 = 8 tokens, feature = 2d = 32
    key = jax.random.PRNGKey(0)
    kx, kp, kq = jax.random.split(key, 3)

    x = jax.random.normal(kx, (B, n + 1, 2 * d), dtype=jnp.float32)
    # deterministic parameter init (module default is eye(d); perturb to be non-trivial)
    w_p = jnp.eye(d, dtype=jnp.float32) + 0.1 * jax.random.normal(kp, (d, d), jnp.float32)
    w_q = jnp.eye(d, dtype=jnp.float32) + 0.1 * jax.random.normal(kq, (d, d), jnp.float32)

    ok = True
    for use_mask in (True, False):
        out = tf_linear_att_forward(x, w_p, w_q, n, d, mask=use_mask)
        out = jax.block_until_ready(out)
        ref = tf_linear_att_reference(x, w_p, w_q, n, d, mask=use_mask)
        assert out.shape == (B, d), out.shape
        assert jnp.allclose(out, ref, atol=1e-4, rtol=1e-4), (
            "mismatch vs reference (mask=%s)" % use_mask,
            float(jnp.max(jnp.abs(out - ref))))
    print("KERNEL_OK")
</pallas_src>

<mosaic_0001>
module attributes {stable_mosaic.version = 11 : i64} {
  func.func @_tf_linear_att_kernel(%arg0: i32, %arg1: memref<2x8x32xf32, #tpu.memory_space<vmem>>, %arg2: memref<16x16xf32, #tpu.memory_space<vmem>>, %arg3: memref<16x16xf32, #tpu.memory_space<vmem>>, %arg4: memref<2x16xf32, #tpu.memory_space<vmem>>) attributes {dimension_semantics = [#tpu.dimension_semantics<parallel>], iteration_bounds = array<i64: 1>, scalar_prefetch = 0 : i64, scratch_operands = 0 : i64, tpu.core_type = #tpu.core_type<tc>, window_params = [{transform_indices = @transform_0, window_bounds = array<i64: 2, 8, 32>}, {pipeline_mode = #tpu.pipeline_mode<synchronous>, transform_indices = @transform_1, window_bounds = array<i64: 16, 16>}, {pipeline_mode = #tpu.pipeline_mode<synchronous>, transform_indices = @transform_2, window_bounds = array<i64: 16, 16>}, {transform_indices = @transform_3, window_bounds = array<i64: 2, 16>}]} {
    %c0 = arith.constant 0 : index
    %c0_0 = arith.constant 0 : index
    %c0_1 = arith.constant 0 : index
    %0 = vector.load %arg1[%c0, %c0_0, %c0_1] : memref<2x8x32xf32, #tpu.memory_space<vmem>>, vector<2x8x32xf32>
    %1 = vector.extract_strided_slice %0 {offsets = [0, 0, 0], sizes = [2, 8, 16], strides = [1, 1, 1]} : vector<2x8x32xf32> to vector<2x8x16xf32>
    %2 = vector.extract_strided_slice %0 {offsets = [0, 0, 16], sizes = [2, 8, 16], strides = [1, 1, 1]} : vector<2x8x32xf32> to vector<2x8x16xf32>
    %3 = vector.extract_strided_slice %0 {offsets = [0, 7, 0], sizes = [2, 1, 16], strides = [1, 1, 1]} : vector<2x8x32xf32> to vector<2x1x16xf32>
    %4 = vector.shape_cast %3 : vector<2x1x16xf32> to vector<2x16xf32>
    %c0_2 = arith.constant 0 : index
    %c0_3 = arith.constant 0 : index
    %5 = vector.load %arg2[%c0_2, %c0_3] : memref<16x16xf32, #tpu.memory_space<vmem>>, vector<16x16xf32>
    %cst = arith.constant dense<0.000000e+00> : vector<2x16xf32>
    %6 = tpu.matmul %4, %5, %cst {dimension_numbers = #tpu.dot_dimension_numbers<[1], [0], [0], [1], [0, 0, 1, 1], [], []>} : vector<2x16xf32>, vector<16x16xf32>, vector<2x16xf32> -> vector<2x16xf32>
    %7 = vector.shape_cast %6 : vector<2x16xf32> to vector<2x1x16xf32>
    %8 = vector.broadcast %7 : vector<2x1x16xf32> to vector<2x8x16xf32>
    %9 = arith.mulf %8, %1 : vector<2x8x16xf32>
    %cst_4 = arith.constant dense<0.000000e+00> : vector<2x8xf32>
    %10 = vector.multi_reduction <add>, %9, %cst_4 [2] : vector<2x8x16xf32> to vector<2x8xf32>
    %11 = tpu.iota {dimensions = array<i32: 1>} : vector<2x8xi32>
    %c7_i32 = arith.constant 7 : i32
    %12 = vector.broadcast %c7_i32 : i32 to vector<2x8xi32>
    %13 = arith.cmpi eq, %11, %12 : vector<2x8xi32>
    %cst_5 = arith.constant 0.000000e+00 : f32
    %14 = vector.broadcast %cst_5 : f32 to vector<2x8xf32>
    %15 = arith.select %13, %14, %10 : vector<2x8xi1>, vector<2x8xf32>
    %16 = vector.shape_cast %15 : vector<2x8xf32> to vector<2x8x1xf32>
    %17 = vector.broadcast %16 : vector<2x8x1xf32> to vector<2x8x16xf32>
    %18 = arith.mulf %17, %2 : vector<2x8x16xf32>
    %cst_6 = arith.constant dense<0.000000e+00> : vector<2x16xf32>
    %19 = vector.multi_reduction <add>, %18, %cst_6 [1] : vector<2x8x16xf32> to vector<2x16xf32>
    %c0_7 = arith.constant 0 : index
    %c0_8 = arith.constant 0 : index
    %20 = vector.load %arg3[%c0_7, %c0_8] : memref<16x16xf32, #tpu.memory_space<vmem>>, vector<16x16xf32>
    %cst_9 = arith.constant dense<0.000000e+00> : vector<2x16xf32>
    %21 = tpu.matmul %19, %20, %cst_9 {dimension_numbers = #tpu.dot_dimension_numbers<[1], [0], [0], [1], [0, 0, 1, 1], [], []>} : vector<2x16xf32>, vector<16x16xf32>, vector<2x16xf32> -> vector<2x16xf32>
    %22 = vector.extract_strided_slice %0 {offsets = [0, 7, 16], sizes = [2, 1, 16], strides = [1, 1, 1]} : vector<2x8x32xf32> to vector<2x1x16xf32>
    %23 = vector.shape_cast %22 : vector<2x1x16xf32> to vector<2x16xf32>
    %cst_10 = arith.constant 0.142857149 : f32
    %24 = vector.broadcast %cst_10 : f32 to vector<2x16xf32>
    %25 = arith.mulf %21, %24 : vector<2x16xf32>
    %26 = arith.addf %23, %25 : vector<2x16xf32>
    %c0_11 = arith.constant 0 : index
    %c0_12 = arith.constant 0 : index
    %27 = vector.load %arg4[%c0_11, %c0_12] : memref<2x16xf32, #tpu.memory_space<vmem>>, vector<2x16xf32>
    tpu.vector_store %arg4[%c0_11, %c0_12], %26 {strides = array<i32>} : memref<2x16xf32, #tpu.memory_space<vmem>>, vector<2x16xf32>,
    return
  }
  func.func @transform_0(%arg0: i32) -> (i32, i32, i32) {
    %c0_i32 = arith.constant 0 : i32
    %c0_i32_0 = arith.constant 0 : i32
    %c0_i32_1 = arith.constant 0 : i32
    return %arg0, %c0_i32, %c0_i32_0 : i32, i32, i32
  }
  func.func @transform_1(%arg0: i32) -> (i32, i32) {
    %c0_i32 = arith.constant 0 : i32
    %c0_i32_0 = arith.constant 0 : i32
    %c0_i32_1 = arith.constant 0 : i32
    return %c0_i32, %c0_i32_0 : i32, i32
  }
  func.func @transform_2(%arg0: i32) -> (i32, i32) {
    %c0_i32 = arith.constant 0 : i32
    %c0_i32_0 = arith.constant 0 : i32
    %c0_i32_1 = arith.constant 0 : i32
    return %c0_i32, %c0_i32_0 : i32, i32
  }
  func.func @transform_3(%arg0: i32) -> (i32, i32) {
    %c0_i32 = arith.constant 0 : i32
    %c0_i32_0 = arith.constant 0 : i32
    return %arg0, %c0_i32 : i32, i32
  }
}

</mosaic_0001>

<llo_original>
// kernel: tpu_custom_call.1
$region0: #{tpu_custom_call.1}
  #allocation0 [shape = 'u32[]', space=smem, size = 0x4, offset = 0x4, fixed_abs, tag = 'smem constant byte address 0x4 - core index']
  #allocation1 [shape = 'u32[72,128]{1,0:T(1,128)}', space=vmem, size = 0x9000, scoped, tag = 'internal scratch']
  %s0 = inlined_call_operand.hbm [shape: f32[2,8,32], index: 0, kind: input, shape index: {}]
  %s1 = inlined_call_operand.hbm [shape: f32[16,16], index: 1, kind: input, shape index: {}]
  %s2 = inlined_call_operand.hbm [shape: f32[16,16], index: 2, kind: input, shape index: {}]
  %s3 = inlined_call_operand.hbm [shape: f32[2,16], index: 3, kind: output, shape index: {}]
  %s4 = sld [smem:[#allocation0]]
  $region34: #{tpu_custom_call.1} parent=0
    _
  %s6 = ssub.s32 1, %s4
  %s7 = scalar_select 0, %s6, %s4
  $region1: #{tpu_custom_call.1} parent=0
    #allocation2 [shape = 'u8[8192]{0}', space=vmem, size = 0x2000, scoped, tag = 'input window, operand 0, single buffered']
    #allocation3 [shape = 's32[1]{0}', space=sflag, size = 0x4, scoped, tag = 'scoped memory for tpu_custom_call.1']
    #allocation4 [shape = 's32[1]{0}', space=sflag, size = 0x4, scoped, tag = 'scoped memory for tpu_custom_call.1']
    #allocation5 [shape = 'u8[8192]{0}', space=vmem, size = 0x2000, scoped, tag = 'input window, operand 1, single buffered']
    #allocation6 [shape = 's32[1]{0}', space=sflag, size = 0x4, scoped, tag = 'scoped memory for tpu_custom_call.1']
    #allocation7 [shape = 'u8[8192]{0}', space=vmem, size = 0x2000, scoped, tag = 'input window, operand 2, single buffered']
    #allocation8 [shape = 'u8[1024]{0}', space=vmem, size = 0x400, scoped, tag = 'output window, operand 0, single buffered']
    %8 = vsyncpa [#allocation3], 0
    %9 = vsyncpa [#allocation6], 0
    %10 = vsyncpa [#allocation4], 0
    // Predicated region
    $region2: #{tpu_custom_call.1} parent=1 // pred_check
      _
    $region3: #{tpu_custom_call.1} parent=1 // pred_check_branch
      %12 = sbr.rel (0) target = $region5
    $region4: #{tpu_custom_call.1} parent=1 // pred_region
      %14 = vsyncadd [#allocation3], 0
      %s15 = sshll.u32 %s0, 4
      %s16 = int_to_ptr.hbm [resolvable:$true] %s15
      %s17 = sshll.u32 [#allocation2], 4
      %s18 = int_to_ptr.vmem [resolvable:$true] %s17
      %23 = dma.hbm_to_vmem [thread:$0]  %s16, 256, %s18, [#allocation3], 128, 128, 8
    $region5: #{tpu_custom_call.1} parent=1 // pred_fallthru
      _
    // Predicated region
    $region6: #{tpu_custom_call.1} parent=1 // pred_check
      _
    $region7: #{tpu_custom_call.1} parent=1 // pred_check_branch
      %25 = sbr.rel (0) target = $region9
    $region8: #{tpu_custom_call.1} parent=1 // pred_region
      %27 = vsyncadd [#allocation6], 0
      %s28 = sshll.u32 %s1, 4
      %s29 = int_to_ptr.hbm [resolvable:$true] %s28
      %s30 = sshll.u32 [#allocation5], 4
      %s31 = int_to_ptr.vmem [resolvable:$true] %s30
      %36 = dma.hbm_to_vmem [thread:$0]  %s29, 256, %s31, [#allocation6], 128, 128, 8
    $region9: #{tpu_custom_call.1} parent=1 // pred_fallthru
      _
    // Predicated region
    $region10: #{tpu_custom_call.1} parent=1 // pred_check
      _
    $region11: #{tpu_custom_call.1} parent=1 // pred_check_branch
      %38 = sbr.rel (0) target = $region13
    $region12: #{tpu_custom_call.1} parent=1 // pred_region
      %40 = vsyncadd [#allocation6], 0
      %s41 = sshll.u32 %s2, 4
      %s42 = int_to_ptr.hbm [resolvable:$true] %s41
      %s43 = sshll.u32 [#allocation7], 4
      %s44 = int_to_ptr.vmem [resolvable:$true] %s43
      %49 = dma.hbm_to_vmem [thread:$0]  %s42, 256, %s44, [#allocation6], 128, 128, 8
    $region13: #{tpu_custom_call.1} parent=1 // pred_fallthru
      _
    // Predicated region
    $region14: #{tpu_custom_call.1} parent=1 // pred_check
      _
    $region15: #{tpu_custom_call.1} parent=1 // pred_check_branch
      %51 = sbr.rel (0) target = $region17
    $region16: #{tpu_custom_call.1} parent=1 // pred_region
      %53 = dma.done [#allocation3], 256
    $region17: #{tpu_custom_call.1} parent=1 // pred_fallthru
      _
    // Predicated region
    $region18: #{tpu_custom_call.1} parent=1 // pred_check
      _
    $region19: #{tpu_custom_call.1} parent=1 // pred_check_branch
      %55 = sbr.rel (0) target = $region21
    $region20: #{tpu_custom_call.1} parent=1 // pred_region
      %57 = dma.done [#allocation6], 256
    $region21: #{tpu_custom_call.1} parent=1 // pred_fallthru
      _
    // Predicated region
    $region22: #{tpu_custom_call.1} parent=1 // pred_check
      _
    $region23: #{tpu_custom_call.1} parent=1 // pred_check_branch
      %59 = sbr.rel (0) target = $region25
    $region24: #{tpu_custom_call.1} parent=1 // pred_region
      %61 = dma.done [#allocation6], 256
    $region25: #{tpu_custom_call.1} parent=1 // pred_fallthru
      _
    %v62 = vld [vmem:[#allocation2] sm:$0xff]
    %v63 = vld [vmem:[#allocation2 + $0x8] sm:$0xff]
    %v64 = vld [vmem:[#allocation5] sm:$0xff]
    %v65 = vld [vmem:[#allocation5 + $0x8] sm:$0xff]
    %v68 = vrot.slane %v62, 7
    %v69 = vrot.slane %v63, 6
    %vm70 = vcmask 1041409
    %v71 = vsel %vm70, %v69, %v68
    %vm72 = vcmask 130048
    %v73 = vsel %vm72, %v71, 0
    %75 = vmatpush.msra.mxu0 0.0
    %76 = vmatpush.msra.mxu0 0.0
    %77 = vmatpush.msra.mxu0 0.0
    %78 = vmatpush.msra.mxu0 0.0
    %79 = vmatpush.msra.mxu0 0.0
    %80 = vmatpush.msra.mxu0 0.0
    %81 = vmatpush.msra.mxu0 0.0
    %82 = vmatpush.msra.mxu0 0.0
    %83 = vmatpush.msra.mxu0 0.0
    %84 = vmatpush.msra.mxu0 0.0
    %85 = vmatpush.msra.mxu0 0.0
    %86 = vmatpush.msra.mxu0 0.0
    %87 = vmatpush.msra.mxu0 0.0
    %88 = vmatpush.msra.mxu0 0.0
    %89 = vmatpush.msra.mxu0 %v65
    %90 = vmatpush.msra.mxu0 %v64
    %91 = vmatmul.f32.gmra.mxu0 %v73
    %v92 = vpop.f32.mrf.mxu0
    %v93 = vadd.f32 0.0, %v92
    %94 = vdwg.mxu0
    %v96 = vrot.slane %v93, 1
    %v97 = vperm.slane %v93, 0
    %v98 = vperm.slane %v96, 0
    %v101 = vmul.f32 %v97, %v62
    %v102 = vmul.f32 %v98, %v63
    %v103 = vsel %vm72, %v101, 0.0
    %104 = vadd.xlane.f32.xlu0 %v103
    %v105 = vpop.xlane.xlu0 %104
    %v106 = vsel %vm72, %v102, 0.0
    %107 = vadd.xlane.f32.xlu0 %v106
    %v108 = vpop.xlane.xlu0 %107
    %v109 = vlaneseq
    %v110 = vand.u32 %v109, 127
    %vm111 = vcmp.eq.s32.totalorder %v110, 7
    %v114 = vperm.slane %v105, %v110
    %v115 = vperm.slane %v108, %v110
    %v116 = vsel %vm70, %v115, %v114
    %v118 = vsel %vm111, 0.0, %v116
    %v119 = vperm.slane %v118, 0
    %v120 = vlaneseq
    %v121 = vshrl.u32 %v120, 7
    %123 = vset.pattern.permute.xlu0 %v121
    %124 = vperm.xlu0 %123, %v119
    %v125 = vpop.permute.xlu0 %124
    %v126 = vperm.slane %v118, 1
    %v127 = vlaneseq
    %v128 = vshrl.u32 %v127, 7
    %130 = vset.pattern.permute.xlu0 %v128
    %131 = vperm.xlu0 %130, %v126
    %v132 = vpop.permute.xlu0 %131
    %v133 = vmul.f32 %v125, %v62
    %v134 = vmul.f32 %v132, %v63
    %vm135 = vcmask 261248
    %v136 = vsel %vm135, %v133, 0.0
    %v137 = vrot.slane %v136, 4
    %v138 = vadd.f32 %v136, %v137
    %v139 = vrot.slane %v138, 2
    %v140 = vadd.f32 %v138, %v139
    %v141 = vrot.slane %v140, 1
    %v142 = vadd.f32 %v140, %v141
    %v143 = vsel %vm135, %v134, 0.0
    %v144 = vrot.slane %v143, 4
    %v145 = vadd.f32 %v143, %v144
    %v146 = vrot.slane %v145, 2
    %v147 = vadd.f32 %v145, %v146
    %v148 = vrot.slane %v147, 1
    %v149 = vadd.f32 %v147, %v148
    %v150 = vld [vmem:[#allocation7] sm:$0xff]
    %v151 = vld [vmem:[#allocation7 + $0x8] sm:$0xff]
    %v154 = vsel %vm70, %v149, %v142
    %155 = vrot.lane.b32.xlu0 %v154, 112
    %v156 = vpop.permute.xlu0 %155
    %v157 = vsel %vm72, %v156, 0
    %159 = vmatpush.msra.mxu0 0.0
    %160 = vmatpush.msra.mxu0 0.0
    %161 = vmatpush.msra.mxu0 0.0
    %162 = vmatpush.msra.mxu0 0.0
    %163 = vmatpush.msra.mxu0 0.0
    %164 = vmatpush.msra.mxu0 0.0
    %165 = vmatpush.msra.mxu0 0.0
    %166 = vmatpush.msra.mxu0 0.0
    %167 = vmatpush.msra.mxu0 0.0
    %168 = vmatpush.msra.mxu0 0.0
    %169 = vmatpush.msra.mxu0 0.0
    %170 = vmatpush.msra.mxu0 0.0
    %171 = vmatpush.msra.mxu0 0.0
    %172 = vmatpush.msra.mxu0 0.0
    %173 = vmatpush.msra.mxu0 %v151
    %174 = vmatpush.msra.mxu0 %v150
    %175 = vmatmul.f32.gmra.mxu0 %v157
    %v176 = vpop.f32.mrf.mxu0
    %v177 = vadd.f32 0.0, %v176
    %178 = vdwg.mxu0
    %v179 = vmul.f32 %v177, 0.14285715
    %v181 = vrot.slane %v179, 1
    %v182 = vrot.slane %v179, 2
    %183 = vrot.lane.b32.xlu0 %v181, 16
    %v184 = vpop.permute.xlu0 %183
    %185 = vrot.lane.b32.xlu0 %v182, 16
    %v186 = vpop.permute.xlu0 %185
    %v189 = vadd.f32 %v62, %v184
    %v190 = vadd.f32 %v63, %v186
    %v193 = vrot.slane %v190, 7
    %194 = vrot.lane.b32.xlu0 %v189, 112
    %v195 = vpop.permute.xlu0 %194
    %196 = vrot.lane.b32.xlu0 %v193, 112
    %v197 = vpop.permute.xlu0 %196
    %vm200 = vcmask 130055
    %201 = vst.msk [vmem:[#allocation8 - $0x7] sm:$0x80] %vm200, %v195
    %vm202 = vcmask 122880
    %203 = vst.msk [vmem:[#allocation8 + $0x1] sm:$0x1] %vm202, %v197
    // Predicated region
    $region26: #{tpu_custom_call.1} parent=1 // pred_check
      _
    $region27: #{tpu_custom_call.1} parent=1 // pred_check_branch
      %205 = sbr.rel (0) target = $region29
    $region28: #{tpu_custom_call.1} parent=1 // pred_region
      %207 = vsyncadd [#allocation4], 0
      %s209 = sshll.u32 [#allocation8], 4
      %s210 = int_to_ptr.vmem [resolvable:$true] %s209
      %s211 = sshll.u32 %s3, 4
      %s212 = int_to_ptr.hbm [resolvable:$true] %s211
      %214 = dma.vmem_to_hbm [thread:$0]  %s210, 32, %s212, [#allocation4]
    $region29: #{tpu_custom_call.1} parent=1 // pred_fallthru
      _
    // Predicated region
    $region30: #{tpu_custom_call.1} parent=1 // pred_check
      _
    $region31: #{tpu_custom_call.1} parent=1 // pred_check_branch
      %216 = sbr.rel (0) target = $region33
    $region32: #{tpu_custom_call.1} parent=1 // pred_region
      %218 = dma.done [#allocation4], 32
    $region33: #{tpu_custom_call.1} parent=1 // pred_fallthru
      _
    %219 = vsyncpa [#allocation3], 1
    %220 = vsyncpa [#allocation6], 1
    %221 = vsyncpa [#allocation4], 1

</llo_original>
